<compile_context>
chip_gen: v7x
topology: tpu7x:2x2x1
jax: 0.10.0
libtpu: 0.0.40
codegen_flags: <defaults>
</compile_context>

<pallas_src>
import numpy as np
import jax
import jax.numpy as jnp
from jax.experimental import pallas as pl
from jax.experimental.pallas import tpu as pltpu

LANE = 128         # lane width of a vreg (last dim)
MXU_WIDE = 256     # v6e/v7x MXU tile width
SUBLANE_F32 = 8
SUBLANE_BF16 = 16  # bf16 packs 16 rows per sublane group


def _round_up(x, m):
    return (x + m - 1) // m * m


def _pad_dim(d):
    # Lane-dense padding. Tiny dims -> 128 (saturates v5e's 128x128 MXU); dims that are
    # already >128 -> multiples of 256 so the v6e/v7x 256-wide MXU is not underfilled.
    return _round_up(d, LANE) if d <= LANE else _round_up(d, MXU_WIDE)


# ----------------------------------------------------------------------------
# Pallas kernel: whole CFCN forward for one batch tile. Weights/biases/bin mask
# are grid-invariant and live fully in VMEM; only the batch dimension is gridded.
# ----------------------------------------------------------------------------
def make_cfcn_kernel(n_layers, act_dtype):
    def kernel(*refs):
        x_ref = refs[0]
        layer_refs = refs[1:1 + 2 * n_layers]          # (w0, b0, w1, b1, ...)
        bin_ref = refs[1 + 2 * n_layers]
        out_ref = refs[2 + 2 * n_layers]

        h = x_ref[...]                                  # bf16 activations
        for li in range(n_layers):
            w_ref = layer_refs[2 * li]
            b_ref = layer_refs[2 * li + 1]
            # MaskedLinear: the DAG mask is already fused into w outside the kernel.
            h = jnp.dot(h.astype(w_ref.dtype), w_ref[...],
                        preferred_element_type=jnp.float32) + b_ref[...]
            if li < n_layers - 1:
                ha = h.astype(act_dtype)                # bf16 Swish (next matmul is bf16 anyway)
                h = ha * jax.nn.sigmoid(ha)
                # TODO(synk): nn.Dropout(p=0.5) is stochastic in train mode; modeled
                # as eval-mode identity here (inference-only kernel).
        # Per-variable output head: sigmoid for 'bin' columns, identity for 'cont'.
        out_ref[...] = jnp.where(bin_ref[...] != 0.0,
                                 jax.nn.sigmoid(h), h).astype(out_ref.dtype)
    return kernel


# ----------------------------------------------------------------------------
# One-time parameter preprocessing (hoisted out of the per-call forward path).
# ----------------------------------------------------------------------------
def prepare_cfcn_params(masked_params, bin_mask, in_features, *,
                        compute_dtype=jnp.bfloat16):
    """Pads / casts (W*mask, b) once.

    masked_params: list of (W_masked, bias), W_masked (d_in, d_out) with the DAG mask
                   already fused (W * mask), bias (d_out,).
    bin_mask:      (D,) float32, 1.0 where var_type == 'bin', else 0.0.
    """
    dims = [in_features] + [w.shape[1] for w, _ in masked_params]
    assert dims[-1] == in_features, "CFCN is an autoencoder: last width must equal D"
    pdims = [_pad_dim(d) for d in dims]

    ops = []
    for li, (w, b) in enumerate(masked_params):
        di, do = w.shape
        w_p = jnp.zeros((pdims[li], pdims[li + 1]), compute_dtype)
        w_p = w_p.at[:di, :do].set(jnp.asarray(w).astype(compute_dtype))
        b_p = jnp.zeros((1, pdims[li + 1]), jnp.float32)
        b_p = b_p.at[0, :do].set(jnp.asarray(b).reshape(-1).astype(jnp.float32))
        ops += [w_p, b_p]
    bin_p = jnp.zeros((1, pdims[0]), jnp.float32)
    bin_p = bin_p.at[0, :in_features].set(
        jnp.asarray(bin_mask).reshape(-1).astype(jnp.float32))

    # TODO(synk): if sum of padded bf16 weights exceeds ~24 MiB, switch to a
    # weight-streaming variant (memory_space=pl.ANY + per-layer double-buffered DMA)
    # so the kernel still fits v7x's 64 MiB VMEM.
    return {"ops": [jax.device_put(o) for o in ops],
            "bin": jax.device_put(bin_p),
            "dims": dims, "pdims": pdims, "dtype": compute_dtype}


def _invariant_spec(shape, single_buffer):
    """Grid-invariant operand: same block every grid step (DMA'd once)."""
    idx = lambda *_: (0,) * len(shape)
    if single_buffer:
        try:
            return pl.BlockSpec(shape, idx,
                                pipeline_mode=pl.Buffered(buffer_count=1))
        except (TypeError, AttributeError):
            pass  # older Pallas without pipeline_mode / Buffered
    return pl.BlockSpec(shape, idx)


# ----------------------------------------------------------------------------
# Forward wrapper
# ----------------------------------------------------------------------------
def cfcn_forward(x, prepared, *, max_tile_b=256, min_grid=2,
                 out_dtype=jnp.float32, act_dtype=None,
                 single_buffer_invariants=True):
    """CFCN inference forward. x: (B, ...) flattened to (B, D) like X.view(B, -1)."""
    compute_dtype = prepared["dtype"]
    act_dtype = compute_dtype if act_dtype is None else act_dtype
    dims, pdims = prepared["dims"], prepared["pdims"]
    n_layers = len(prepared["ops"]) // 2

    x = x.reshape(x.shape[0], -1)
    B, D = x.shape
    assert D == dims[0], f"expected {dims[0]} input features, got {D}"
    Dp = pdims[0]

    # --- batch tiling -------------------------------------------------------
    # >= min_grid steps when the batch allows (so both v7x TCs get work), tiles
    # <= max_tile_b, 16-row aligned (bf16 sublane pack), minimal zero padding.
    min_tile = SUBLANE_BF16 if compute_dtype == jnp.bfloat16 else SUBLANE_F32
    max_tiles = max(1, _round_up(B, min_tile) // min_tile)
    n_tiles = min(max(min_grid, pl.cdiv(B, max_tile_b)), max_tiles)
    tile_b = _round_up(pl.cdiv(B, n_tiles), min_tile)
    n_tiles = pl.cdiv(B, tile_b)
    Bp = n_tiles * tile_b

    # Zero-padded x: zero rows/cols contribute exactly 0, padded output sliced off.
    x_p = jnp.zeros((Bp, Dp), compute_dtype).at[:B, :D].set(x.astype(compute_dtype))

    # --- VMEM budget (explicit; default scoped limit is only 16/32 MiB) ------
    w_bytes = sum(int(np.prod(o.shape)) * o.dtype.itemsize for o in prepared["ops"])
    io_bytes = 2 * tile_b * Dp * np.dtype(compute_dtype).itemsize      # x, double-buffered
    io_bytes += 2 * tile_b * Dp * np.dtype(out_dtype).itemsize         # out, double-buffered
    act_bytes = tile_b * max(pdims) * 8                                 # f32 activations headroom
    need = w_bytes + Dp * 4 + io_bytes + act_bytes
    vmem_bytes = int(min(max(need * 1.5 + (2 << 20), 32 << 20), 64 << 20))

    # --- cost estimate (lets XLA schedule the surrounding pad/slice ops) -----
    flops = 2 * Bp * sum(pdims[i] * pdims[i + 1] for i in range(n_layers))
    transcendentals = Bp * (sum(pdims[1:-1]) + Dp)
    bytes_accessed = (w_bytes + Dp * 4
                      + Bp * Dp * np.dtype(compute_dtype).itemsize
                      + Bp * Dp * np.dtype(out_dtype).itemsize)
    cost = pl.CostEstimate(flops=flops, transcendentals=transcendentals,
                           bytes_accessed=bytes_accessed)

    def _run(single_buffer):
        in_specs = [pl.BlockSpec((tile_b, Dp), lambda i: (i, 0))]       # x (batch-tiled)
        for li in range(n_layers):
            in_specs.append(_invariant_spec((pdims[li], pdims[li + 1]), single_buffer))
            in_specs.append(_invariant_spec((1, pdims[li + 1]), single_buffer))
        in_specs.append(_invariant_spec((1, Dp), single_buffer))        # binary-column mask

        return pl.pallas_call(
            make_cfcn_kernel(n_layers, act_dtype),
            out_shape=jax.ShapeDtypeStruct((Bp, Dp), out_dtype),
            grid=(n_tiles,),
            in_specs=in_specs,
            out_specs=pl.BlockSpec((tile_b, Dp), lambda i: (i, 0)),
            compiler_params=pltpu.CompilerParams(
                dimension_semantics=("parallel",),
                vmem_limit_bytes=vmem_bytes),
            cost_estimate=cost,
        )(x_p, *prepared["ops"], prepared["bin"])

    try:
        out = _run(single_buffer_invariants)
    except Exception:
        if not single_buffer_invariants:
            raise
        out = _run(False)   # fall back if this Pallas rejects Buffered(1)
    return out[:B, :D]


# ----------------------------------------------------------------------------
# Parameter / mask construction (plain JAX/NumPy glue, deterministic)
# ----------------------------------------------------------------------------
def tile_mask(mask, in_features, out_features):
    """Replicates MaskedLinear.set_mask's np.repeat tiling."""
    r, c = mask.shape
    return np.repeat(np.repeat(mask, in_features // r, axis=0),
                     out_features // c, axis=1).astype(np.float32)


def make_params(key, neurons_per_layer, adj):
    """Deterministic init: uniform(+-1/sqrt(fan_in)) weights, bias=0.01 (reset_parameters)."""
    D = adj.shape[0]
    other_mask = adj + np.eye(D, dtype=np.float32)
    params = []
    for i in range(len(neurons_per_layer) - 1):
        n_in, n_out = neurons_per_layer[i], neurons_per_layer[i + 1]
        key, sub = jax.random.split(key)
        bound = 1.0 / np.sqrt(n_in)
        w = jax.random.uniform(sub, (n_in, n_out), jnp.float32, -bound, bound)
        m = jnp.asarray(tile_mask(adj if i == 0 else other_mask, n_in, n_out))
        b = jnp.full((n_out,), 0.01, jnp.float32)
        params.append((w, m, b))
    return params


def cfcn_reference(x, params, bin_mask, *, compute_dtype=jnp.bfloat16, act_dtype=None):
    """Pure-JAX reference with the same bf16-operand / f32-accumulate / bf16-Swish math."""
    act_dtype = compute_dtype if act_dtype is None else act_dtype
    h = x.reshape(x.shape[0], -1).astype(compute_dtype)
    n = len(params)
    for li, (w, m, b) in enumerate(params):
        h = jnp.dot(h.astype(compute_dtype), (w * m).astype(compute_dtype),
                    preferred_element_type=jnp.float32) + b[None, :]
        if li < n - 1:
            ha = h.astype(act_dtype)
            h = ha * jax.nn.sigmoid(ha)
    return jnp.where(bin_mask[None, :] != 0.0, jax.nn.sigmoid(h), h)


if __name__ == "__main__":
    # Small synthetic problem: D=8 variables, 3 masked layers [D, 2D, 2D, D].
    D = 8
    neurons_per_layer = [D, 2 * D, 2 * D, D]

    # Simple DAG: strictly-upper-triangular adjacency (i -> j iff i < j).
    adj = np.triu(np.ones((D, D), dtype=np.float32), k=1)

    # var_types: alternate continuous / binary -> binary columns get a sigmoid head.
    var_types = ["cont" if i % 2 == 0 else "bin" for i in range(D)]
    bin_mask = jnp.asarray(
        np.array([1.0 if t == "bin" else 0.0 for t in var_types], dtype=np.float32))

    key = jax.random.PRNGKey(0)
    params = make_params(key, neurons_per_layer, adj)
    # Fuse the (constant) DAG mask into the weights once, outside the kernel,
    # then pad/cast once (hoisted out of the per-call forward path).
    masked_params = [(w * m, b) for (w, m, b) in params]
    prepared = prepare_cfcn_params(masked_params, bin_mask, D,
                                   compute_dtype=jnp.bfloat16)

    ok = True
    for batch in (16, 40):   # 40 exercises multi-tile grid + padded last tile
        key, kx = jax.random.split(key)
        x = jax.random.normal(kx, (batch, D), jnp.float32)

        out = cfcn_forward(x, prepared)
        out = jax.block_until_ready(out)

        ref = cfcn_reference(x, params, bin_mask, compute_dtype=jnp.bfloat16)
        np.testing.assert_allclose(np.asarray(out), np.asarray(ref),
                                   rtol=1e-2, atol=1e-2)

    print("KERNEL_OK")
</pallas_src>

<mosaic_0001>
module attributes {stable_mosaic.version = 11 : i64} {
  func.func @kernel(%arg0: i32, %arg1: memref<16x128xbf16, #tpu.memory_space<vmem>>, %arg2: memref<128x128xbf16, #tpu.memory_space<vmem>>, %arg3: memref<1x128xf32, #tpu.memory_space<vmem>>, %arg4: memref<128x128xbf16, #tpu.memory_space<vmem>>, %arg5: memref<1x128xf32, #tpu.memory_space<vmem>>, %arg6: memref<128x128xbf16, #tpu.memory_space<vmem>>, %arg7: memref<1x128xf32, #tpu.memory_space<vmem>>, %arg8: memref<1x128xf32, #tpu.memory_space<vmem>>, %arg9: memref<16x128xf32, #tpu.memory_space<vmem>>) attributes {dimension_semantics = [#tpu.dimension_semantics<parallel>], iteration_bounds = array<i64: 1>, scalar_prefetch = 0 : i64, scratch_operands = 0 : i64, tpu.core_type = #tpu.core_type<tc>, window_params = [{transform_indices = @transform_0, window_bounds = array<i64: 16, 128>}, {pipeline_mode = #tpu.pipeline_mode<synchronous>, transform_indices = @transform_1, window_bounds = array<i64: 128, 128>}, {pipeline_mode = #tpu.pipeline_mode<synchronous>, transform_indices = @transform_2, window_bounds = array<i64: 1, 128>}, {pipeline_mode = #tpu.pipeline_mode<synchronous>, transform_indices = @transform_3, window_bounds = array<i64: 128, 128>}, {pipeline_mode = #tpu.pipeline_mode<synchronous>, transform_indices = @transform_4, window_bounds = array<i64: 1, 128>}, {pipeline_mode = #tpu.pipeline_mode<synchronous>, transform_indices = @transform_5, window_bounds = array<i64: 128, 128>}, {pipeline_mode = #tpu.pipeline_mode<synchronous>, transform_indices = @transform_6, window_bounds = array<i64: 1, 128>}, {pipeline_mode = #tpu.pipeline_mode<synchronous>, transform_indices = @transform_7, window_bounds = array<i64: 1, 128>}, {transform_indices = @transform_8, window_bounds = array<i64: 16, 128>}]} {
    %c0 = arith.constant 0 : index
    %c0_0 = arith.constant 0 : index
    %0 = vector.load %arg1[%c0, %c0_0] : memref<16x128xbf16, #tpu.memory_space<vmem>>, vector<16x128xbf16>
    %c0_1 = arith.constant 0 : index
    %c0_2 = arith.constant 0 : index
    %1 = vector.load %arg2[%c0_1, %c0_2] : memref<128x128xbf16, #tpu.memory_space<vmem>>, vector<128x128xbf16>
    %cst = arith.constant dense<0.000000e+00> : vector<16x128xf32>
    %2 = tpu.matmul %0, %1, %cst {dimension_numbers = #tpu.dot_dimension_numbers<[1], [0], [0], [1], [0, 0, 1, 1], [], []>} : vector<16x128xbf16>, vector<128x128xbf16>, vector<16x128xf32> -> vector<16x128xf32>
    %c0_3 = arith.constant 0 : index
    %c0_4 = arith.constant 0 : index
    %3 = vector.load %arg3[%c0_3, %c0_4] : memref<1x128xf32, #tpu.memory_space<vmem>>, vector<1x128xf32>
    %4 = vector.broadcast %3 : vector<1x128xf32> to vector<16x128xf32>
    %5 = arith.addf %2, %4 : vector<16x128xf32>
    %6 = arith.truncf %5 : vector<16x128xf32> to vector<16x128xbf16>
    %7 = arith.negf %6 : vector<16x128xbf16>
    %8 = math.exp %7 : vector<16x128xbf16>
    %cst_5 = arith.constant 1.000000e+00 : bf16
    %9 = vector.broadcast %cst_5 : bf16 to vector<16x128xbf16>
    %10 = arith.addf %9, %8 : vector<16x128xbf16>
    %11 = arith.divf %9, %10 : vector<16x128xbf16>
    %12 = arith.mulf %6, %11 : vector<16x128xbf16>
    %c0_6 = arith.constant 0 : index
    %c0_7 = arith.constant 0 : index
    %13 = vector.load %arg4[%c0_6, %c0_7] : memref<128x128xbf16, #tpu.memory_space<vmem>>, vector<128x128xbf16>
    %cst_8 = arith.constant dense<0.000000e+00> : vector<16x128xf32>
    %14 = tpu.matmul %12, %13, %cst_8 {dimension_numbers = #tpu.dot_dimension_numbers<[1], [0], [0], [1], [0, 0, 1, 1], [], []>} : vector<16x128xbf16>, vector<128x128xbf16>, vector<16x128xf32> -> vector<16x128xf32>
    %c0_9 = arith.constant 0 : index
    %c0_10 = arith.constant 0 : index
    %15 = vector.load %arg5[%c0_9, %c0_10] : memref<1x128xf32, #tpu.memory_space<vmem>>, vector<1x128xf32>
    %16 = vector.broadcast %15 : vector<1x128xf32> to vector<16x128xf32>
    %17 = arith.addf %14, %16 : vector<16x128xf32>
    %18 = arith.truncf %17 : vector<16x128xf32> to vector<16x128xbf16>
    %19 = arith.negf %18 : vector<16x128xbf16>
    %20 = math.exp %19 : vector<16x128xbf16>
    %cst_11 = arith.constant 1.000000e+00 : bf16
    %21 = vector.broadcast %cst_11 : bf16 to vector<16x128xbf16>
    %22 = arith.addf %21, %20 : vector<16x128xbf16>
    %23 = arith.divf %21, %22 : vector<16x128xbf16>
    %24 = arith.mulf %18, %23 : vector<16x128xbf16>
    %c0_12 = arith.constant 0 : index
    %c0_13 = arith.constant 0 : index
    %25 = vector.load %arg6[%c0_12, %c0_13] : memref<128x128xbf16, #tpu.memory_space<vmem>>, vector<128x128xbf16>
    %cst_14 = arith.constant dense<0.000000e+00> : vector<16x128xf32>
    %26 = tpu.matmul %24, %25, %cst_14 {dimension_numbers = #tpu.dot_dimension_numbers<[1], [0], [0], [1], [0, 0, 1, 1], [], []>} : vector<16x128xbf16>, vector<128x128xbf16>, vector<16x128xf32> -> vector<16x128xf32>
    %c0_15 = arith.constant 0 : index
    %c0_16 = arith.constant 0 : index
    %27 = vector.load %arg7[%c0_15, %c0_16] : memref<1x128xf32, #tpu.memory_space<vmem>>, vector<1x128xf32>
    %28 = vector.broadcast %27 : vector<1x128xf32> to vector<16x128xf32>
    %29 = arith.addf %26, %28 : vector<16x128xf32>
    %c0_17 = arith.constant 0 : index
    %c0_18 = arith.constant 0 : index
    %30 = vector.load %arg8[%c0_17, %c0_18] : memref<1x128xf32, #tpu.memory_space<vmem>>, vector<1x128xf32>
    %cst_19 = arith.constant 0.000000e+00 : f32
    %31 = vector.broadcast %cst_19 : f32 to vector<1x128xf32>
    %32 = arith.cmpf one, %30, %31 : vector<1x128xf32>
    %33 = arith.negf %29 : vector<16x128xf32>
    %34 = math.exp %33 : vector<16x128xf32>
    %cst_20 = arith.constant 1.000000e+00 : f32
    %35 = vector.broadcast %cst_20 : f32 to vector<16x128xf32>
    %36 = arith.addf %35, %34 : vector<16x128xf32>
    %37 = arith.divf %35, %36 : vector<16x128xf32>
    %38 = vector.shape_cast %32 : vector<1x128xi1> to vector<1x128xi1>
    %39 = vector.broadcast %38 : vector<1x128xi1> to vector<16x128xi1>
    %40 = arith.select %39, %37, %29 : vector<16x128xi1>, vector<16x128xf32>
    %c0_21 = arith.constant 0 : index
    %c0_22 = arith.constant 0 : index
    %41 = vector.load %arg9[%c0_21, %c0_22] : memref<16x128xf32, #tpu.memory_space<vmem>>, vector<16x128xf32>
    tpu.vector_store %arg9[%c0_21, %c0_22], %40 {strides = array<i32>} : memref<16x128xf32, #tpu.memory_space<vmem>>, vector<16x128xf32>,
    return
  }
  func.func @transform_0(%arg0: i32) -> (i32, i32) {
    %c0_i32 = arith.constant 0 : i32
    %c0_i32_0 = arith.constant 0 : i32
    return %arg0, %c0_i32 : i32, i32
  }
  func.func @transform_1(%arg0: i32) -> (i32, i32) {
    %c0_i32 = arith.constant 0 : i32
    %c0_i32_0 = arith.constant 0 : i32
    %c0_i32_1 = arith.constant 0 : i32
    return %c0_i32, %c0_i32_0 : i32, i32
  }
  func.func @transform_2(%arg0: i32) -> (i32, i32) {
    %c0_i32 = arith.constant 0 : i32
    %c0_i32_0 = arith.constant 0 : i32
    %c0_i32_1 = arith.constant 0 : i32
    return %c0_i32, %c0_i32_0 : i32, i32
  }
  func.func @transform_3(%arg0: i32) -> (i32, i32) {
    %c0_i32 = arith.constant 0 : i32
    %c0_i32_0 = arith.constant 0 : i32
    %c0_i32_1 = arith.constant 0 : i32
    return %c0_i32, %c0_i32_0 : i32, i32
  }
  func.func @transform_4(%arg0: i32) -> (i32, i32) {
    %c0_i32 = arith.constant 0 : i32
    %c0_i32_0 = arith.constant 0 : i32
    %c0_i32_1 = arith.constant 0 : i32
    return %c0_i32, %c0_i32_0 : i32, i32
  }
  func.func @transform_5(%arg0: i32) -> (i32, i32) {
    %c0_i32 = arith.constant 0 : i32
    %c0_i32_0 = arith.constant 0 : i32
    %c0_i32_1 = arith.constant 0 : i32
    return %c0_i32, %c0_i32_0 : i32, i32
  }
  func.func @transform_6(%arg0: i32) -> (i32, i32) {
    %c0_i32 = arith.constant 0 : i32
    %c0_i32_0 = arith.constant 0 : i32
    %c0_i32_1 = arith.constant 0 : i32
    return %c0_i32, %c0_i32_0 : i32, i32
  }
  func.func @transform_7(%arg0: i32) -> (i32, i32) {
    %c0_i32 = arith.constant 0 : i32
    %c0_i32_0 = arith.constant 0 : i32
    %c0_i32_1 = arith.constant 0 : i32
    return %c0_i32, %c0_i32_0 : i32, i32
  }
  func.func @transform_8(%arg0: i32) -> (i32, i32) {
    %c0_i32 = arith.constant 0 : i32
    %c0_i32_0 = arith.constant 0 : i32
    return %arg0, %c0_i32 : i32, i32
  }
}

module attributes {stable_mosaic.version = 11 : i64} {
  func.func @kernel(%arg0: i32, %arg1: memref<16x128xbf16, #tpu.memory_space<vmem>>, %arg2: memref<128x128xbf16, #tpu.memory_space<vmem>>, %arg3: memref<1x128xf32, #tpu.memory_space<vmem>>, %arg4: memref<128x128xbf16, #tpu.memory_space<vmem>>, %arg5: memref<1x128xf32, #tpu.memory_space<vmem>>, %arg6: memref<128x128xbf16, #tpu.memory_space<vmem>>, %arg7: memref<1x128xf32, #tpu.memory_space<vmem>>, %arg8: memref<1x128xf32, #tpu.memory_space<vmem>>, %arg9: memref<16x128xf32, #tpu.memory_space<vmem>>) attributes {dimension_semantics = [#tpu.dimension_semantics<parallel>], iteration_bounds = array<i64: 1>, scalar_prefetch = 0 : i64, scratch_operands = 0 : i64, tpu.core_type = #tpu.core_type<tc>, window_params = [{transform_indices = @transform_0, window_bounds = array<i64: 16, 128>}, {pipeline_mode = #tpu.pipeline_mode<synchronous>, transform_indices = @transform_1, window_bounds = array<i64: 128, 128>}, {pipeline_mode = #tpu.pipeline_mode<synchronous>, transform_indices = @transform_2, window_bounds = array<i64: 1, 128>}, {pipeline_mode = #tpu.pipeline_mode<synchronous>, transform_indices = @transform_3, window_bounds = array<i64: 128, 128>}, {pipeline_mode = #tpu.pipeline_mode<synchronous>, transform_indices = @transform_4, window_bounds = array<i64: 1, 128>}, {pipeline_mode = #tpu.pipeline_mode<synchronous>, transform_indices = @transform_5, window_bounds = array<i64: 128, 128>}, {pipeline_mode = #tpu.pipeline_mode<synchronous>, transform_indices = @transform_6, window_bounds = array<i64: 1, 128>}, {pipeline_mode = #tpu.pipeline_mode<synchronous>, transform_indices = @transform_7, window_bounds = array<i64: 1, 128>}, {transform_indices = @transform_8, window_bounds = array<i64: 16, 128>}]} {
    %c0 = arith.constant 0 : index
    %c0_0 = arith.constant 0 : index
    %0 = vector.load %arg1[%c0, %c0_0] : memref<16x128xbf16, #tpu.memory_space<vmem>>, vector<16x128xbf16>
    %c0_1 = arith.constant 0 : index
    %c0_2 = arith.constant 0 : index
    %1 = vector.load %arg2[%c0_1, %c0_2] : memref<128x128xbf16, #tpu.memory_space<vmem>>, vector<128x128xbf16>
    %cst = arith.constant dense<0.000000e+00> : vector<16x128xf32>
    %2 = tpu.matmul %0, %1, %cst {dimension_numbers = #tpu.dot_dimension_numbers<[1], [0], [0], [1], [0, 0, 1, 1], [], []>} : vector<16x128xbf16>, vector<128x128xbf16>, vector<16x128xf32> -> vector<16x128xf32>
    %c0_3 = arith.constant 0 : index
    %c0_4 = arith.constant 0 : index
    %3 = vector.load %arg3[%c0_3, %c0_4] : memref<1x128xf32, #tpu.memory_space<vmem>>, vector<1x128xf32>
    %4 = vector.broadcast %3 : vector<1x128xf32> to vector<16x128xf32>
    %5 = arith.addf %2, %4 : vector<16x128xf32>
    %6 = arith.truncf %5 : vector<16x128xf32> to vector<16x128xbf16>
    %7 = arith.negf %6 : vector<16x128xbf16>
    %8 = math.exp %7 : vector<16x128xbf16>
    %cst_5 = arith.constant 1.000000e+00 : bf16
    %9 = vector.broadcast %cst_5 : bf16 to vector<16x128xbf16>
    %10 = arith.addf %9, %8 : vector<16x128xbf16>
    %11 = arith.divf %9, %10 : vector<16x128xbf16>
    %12 = arith.mulf %6, %11 : vector<16x128xbf16>
    %c0_6 = arith.constant 0 : index
    %c0_7 = arith.constant 0 : index
    %13 = vector.load %arg4[%c0_6, %c0_7] : memref<128x128xbf16, #tpu.memory_space<vmem>>, vector<128x128xbf16>
    %cst_8 = arith.constant dense<0.000000e+00> : vector<16x128xf32>
    %14 = tpu.matmul %12, %13, %cst_8 {dimension_numbers = #tpu.dot_dimension_numbers<[1], [0], [0], [1], [0, 0, 1, 1], [], []>} : vector<16x128xbf16>, vector<128x128xbf16>, vector<16x128xf32> -> vector<16x128xf32>
    %c0_9 = arith.constant 0 : index
    %c0_10 = arith.constant 0 : index
    %15 = vector.load %arg5[%c0_9, %c0_10] : memref<1x128xf32, #tpu.memory_space<vmem>>, vector<1x128xf32>
    %16 = vector.broadcast %15 : vector<1x128xf32> to vector<16x128xf32>
    %17 = arith.addf %14, %16 : vector<16x128xf32>
    %18 = arith.truncf %17 : vector<16x128xf32> to vector<16x128xbf16>
    %19 = arith.negf %18 : vector<16x128xbf16>
    %20 = math.exp %19 : vector<16x128xbf16>
    %cst_11 = arith.constant 1.000000e+00 : bf16
    %21 = vector.broadcast %cst_11 : bf16 to vector<16x128xbf16>
    %22 = arith.addf %21, %20 : vector<16x128xbf16>
    %23 = arith.divf %21, %22 : vector<16x128xbf16>
    %24 = arith.mulf %18, %23 : vector<16x128xbf16>
    %c0_12 = arith.constant 0 : index
    %c0_13 = arith.constant 0 : index
    %25 = vector.load %arg6[%c0_12, %c0_13] : memref<128x128xbf16, #tpu.memory_space<vmem>>, vector<128x128xbf16>
    %cst_14 = arith.constant dense<0.000000e+00> : vector<16x128xf32>
    %26 = tpu.matmul %24, %25, %cst_14 {dimension_numbers = #tpu.dot_dimension_numbers<[1], [0], [0], [1], [0, 0, 1, 1], [], []>} : vector<16x128xbf16>, vector<128x128xbf16>, vector<16x128xf32> -> vector<16x128xf32>
    %c0_15 = arith.constant 0 : index
    %c0_16 = arith.constant 0 : index
    %27 = vector.load %arg7[%c0_15, %c0_16] : memref<1x128xf32, #tpu.memory_space<vmem>>, vector<1x128xf32>
    %28 = vector.broadcast %27 : vector<1x128xf32> to vector<16x128xf32>
    %29 = arith.addf %26, %28 : vector<16x128xf32>
    %c0_17 = arith.constant 0 : index
    %c0_18 = arith.constant 0 : index
    %30 = vector.load %arg8[%c0_17, %c0_18] : memref<1x128xf32, #tpu.memory_space<vmem>>, vector<1x128xf32>
    %cst_19 = arith.constant 0.000000e+00 : f32
    %31 = vector.broadcast %cst_19 : f32 to vector<1x128xf32>
    %32 = arith.cmpf one, %30, %31 : vector<1x128xf32>
    %33 = arith.negf %29 : vector<16x128xf32>
    %34 = math.exp %33 : vector<16x128xf32>
    %cst_20 = arith.constant 1.000000e+00 : f32
    %35 = vector.broadcast %cst_20 : f32 to vector<16x128xf32>
    %36 = arith.addf %35, %34 : vector<16x128xf32>
    %37 = arith.divf %35, %36 : vector<16x128xf32>
    %38 = vector.shape_cast %32 : vector<1x128xi1> to vector<1x128xi1>
    %39 = vector.broadcast %38 : vector<1x128xi1> to vector<16x128xi1>
    %40 = arith.select %39, %37, %29 : vector<16x128xi1>, vector<16x128xf32>
    %c0_21 = arith.constant 0 : index
    %c0_22 = arith.constant 0 : index
    %41 = vector.load %arg9[%c0_21, %c0_22] : memref<16x128xf32, #tpu.memory_space<vmem>>, vector<16x128xf32>
    tpu.vector_store %arg9[%c0_21, %c0_22], %40 {strides = array<i32>} : memref<16x128xf32, #tpu.memory_space<vmem>>, vector<16x128xf32>,
    return
  }
  func.func @transform_0(%arg0: i32) -> (i32, i32) {
    %c0_i32 = arith.constant 0 : i32
    %c0_i32_0 = arith.constant 0 : i32
    return %arg0, %c0_i32 : i32, i32
  }
  func.func @transform_1(%arg0: i32) -> (i32, i32) {
    %c0_i32 = arith.constant 0 : i32
    %c0_i32_0 = arith.constant 0 : i32
    %c0_i32_1 = arith.constant 0 : i32
    return %c0_i32, %c0_i32_0 : i32, i32
  }
  func.func @transform_2(%arg0: i32) -> (i32, i32) {
    %c0_i32 = arith.constant 0 : i32
    %c0_i32_0 = arith.constant 0 : i32
    %c0_i32_1 = arith.constant 0 : i32
    return %c0_i32, %c0_i32_0 : i32, i32
  }
  func.func @transform_3(%arg0: i32) -> (i32, i32) {
    %c0_i32 = arith.constant 0 : i32
    %c0_i32_0 = arith.constant 0 : i32
    %c0_i32_1 = arith.constant 0 : i32
    return %c0_i32, %c0_i32_0 : i32, i32
  }
  func.func @transform_4(%arg0: i32) -> (i32, i32) {
    %c0_i32 = arith.constant 0 : i32
    %c0_i32_0 = arith.constant 0 : i32
    %c0_i32_1 = arith.constant 0 : i32
    return %c0_i32, %c0_i32_0 : i32, i32
  }
  func.func @transform_5(%arg0: i32) -> (i32, i32) {
    %c0_i32 = arith.constant 0 : i32
    %c0_i32_0 = arith.constant 0 : i32
    %c0_i32_1 = arith.constant 0 : i32
    return %c0_i32, %c0_i32_0 : i32, i32
  }
  func.func @transform_6(%arg0: i32) -> (i32, i32) {
    %c0_i32 = arith.constant 0 : i32
    %c0_i32_0 = arith.constant 0 : i32
    %c0_i32_1 = arith.constant 0 : i32
    return %c0_i32, %c0_i32_0 : i32, i32
  }
  func.func @transform_7(%arg0: i32) -> (i32, i32) {
    %c0_i32 = arith.constant 0 : i32
    %c0_i32_0 = arith.constant 0 : i32
    %c0_i32_1 = arith.constant 0 : i32
    return %c0_i32, %c0_i32_0 : i32, i32
  }
  func.func @transform_8(%arg0: i32) -> (i32, i32) {
    %c0_i32 = arith.constant 0 : i32
    %c0_i32_0 = arith.constant 0 : i32
    return %arg0, %c0_i32 : i32, i32
  }
}

</mosaic_0001>

<llo_original>
// kernel: tpu_custom_call.1
$region0: #{tpu_custom_call.1}
  #allocation0 [shape = 'u32[]', space=smem, size = 0x4, offset = 0x4, fixed_abs, tag = 'smem constant byte address 0x4 - core index']
  #allocation1 [shape = 'u32[144,128]{1,0:T(1,128)}', space=vmem, size = 0x12000, scoped, tag = 'internal scratch']
  %s0 = inlined_call_operand.hbm [shape: bf16[16,128], index: 0, kind: input, shape index: {}]
  %s1 = inlined_call_operand.hbm [shape: bf16[128,128], index: 1, kind: input, shape index: {}]
  %s2 = inlined_call_operand.vmem [shape: f32[1,128], index: 2, kind: input, shape index: {}]
  %s3 = inlined_call_operand.hbm [shape: bf16[128,128], index: 3, kind: input, shape index: {}]
  %s4 = inlined_call_operand.vmem [shape: f32[1,128], index: 4, kind: input, shape index: {}]
  %s5 = inlined_call_operand.hbm [shape: bf16[128,128], index: 5, kind: input, shape index: {}]
  %s6 = inlined_call_operand.vmem [shape: f32[1,128], index: 6, kind: input, shape index: {}]
  %s7 = inlined_call_operand.vmem [shape: f32[1,128], index: 7, kind: input, shape index: {}]
  %s8 = inlined_call_operand.hbm [shape: f32[16,128], index: 8, kind: output, shape index: {}]
  %s9 = sld [smem:[#allocation0]]
  $region58: #{tpu_custom_call.1} parent=0
    _
  %s11 = ssub.s32 1, %s9
  %s12 = scalar_select 0, %s11, %s9
  $region1: #{tpu_custom_call.1} parent=0
    #allocation2 [shape = 'u8[4096]{0}', space=vmem, size = 0x1000, scoped, tag = 'input window, operand 0, single buffered']
    #allocation3 [shape = 's32[1]{0}', space=sflag, size = 0x4, scoped, tag = 'scoped memory for tpu_custom_call.1']
    #allocation4 [shape = 's32[1]{0}', space=sflag, size = 0x4, scoped, tag = 'scoped memory for tpu_custom_call.1']
    #allocation5 [shape = 'u8[32768]{0}', space=vmem, size = 0x8000, scoped, tag = 'input window, operand 1, single buffered']
    #allocation6 [shape = 's32[1]{0}', space=sflag, size = 0x4, scoped, tag = 'scoped memory for tpu_custom_call.1']
    #allocation7 [shape = 'u8[32768]{0}', space=vmem, size = 0x8000, scoped, tag = 'input window, operand 3, single buffered']
    #allocation8 [shape = 'u8[32768]{0}', space=vmem, size = 0x8000, scoped, tag = 'input window, operand 5, single buffered']
    #allocation9 [shape = 's32[1]{0}', space=sflag, size = 0x4, scoped, tag = 'scoped memory for tpu_custom_call.1']
    #allocation10 [shape = 'u8[8192]{0}', space=vmem, size = 0x2000, scoped, tag = 'output window, operand 0, single buffered']
    %13 = vsyncpa [#allocation3], 0
    %14 = vsyncpa [#allocation6], 0
    %15 = vsyncpa [#allocation9], 0
    %16 = vsyncpa [#allocation4], 0
    // Predicated region
    $region2: #{tpu_custom_call.1} parent=1 // pred_check
      _
    $region3: #{tpu_custom_call.1} parent=1 // pred_check_branch
      %18 = sbr.rel (0) target = $region5
    $region4: #{tpu_custom_call.1} parent=1 // pred_region
      %s20 = ssub.s32 128, 128
      %21 = vsyncadd [#allocation3], %s20
      %s22 = sshll.u32 [#allocation2], 4
      %s23 = int_to_ptr.vmem [resolvable:$true] %s22
      %28 = dma.hbm_to_vmem [thread:$0]  %s0, 128, %s23, [#allocation3], 64, 64, 4
    $region5: #{tpu_custom_call.1} parent=1 // pred_fallthru
      _
    // Predicated region
    $region6: #{tpu_custom_call.1} parent=1 // pred_check
      _
    $region7: #{tpu_custom_call.1} parent=1 // pred_check_branch
      %30 = sbr.rel (0) target = $region9
    $region8: #{tpu_custom_call.1} parent=1 // pred_region
      %s32 = ssub.s32 1024, 1024
      %33 = vsyncadd [#allocation6], %s32
      %s34 = sshll.u32 [#allocation5], 4
      %s35 = int_to_ptr.vmem [resolvable:$true] %s34
      %40 = dma.hbm_to_vmem [thread:$0]  %s1, 1024, %s35, [#allocation6], 64, 64, 4
    $region9: #{tpu_custom_call.1} parent=1 // pred_fallthru
      _
    // Predicated region
    $region10: #{tpu_custom_call.1} parent=1 // pred_check
      _
    $region11: #{tpu_custom_call.1} parent=1 // pred_check_branch
      %42 = sbr.rel (0) target = $region13
    $region12: #{tpu_custom_call.1} parent=1 // pred_region
      _
    $region13: #{tpu_custom_call.1} parent=1 // pred_fallthru
      _
    // Predicated region
    $region14: #{tpu_custom_call.1} parent=1 // pred_check
      _
    $region15: #{tpu_custom_call.1} parent=1 // pred_check_branch
      %44 = sbr.rel (0) target = $region17
    $region16: #{tpu_custom_call.1} parent=1 // pred_region
      %s46 = ssub.s32 1024, 1024
      %47 = vsyncadd [#allocation6], %s46
      %s48 = sshll.u32 [#allocation7], 4
      %s49 = int_to_ptr.vmem [resolvable:$true] %s48
      %54 = dma.hbm_to_vmem [thread:$0]  %s3, 1024, %s49, [#allocation6], 64, 64, 4
    $region17: #{tpu_custom_call.1} parent=1 // pred_fallthru
      _
    // Predicated region
    $region18: #{tpu_custom_call.1} parent=1 // pred_check
      _
    $region19: #{tpu_custom_call.1} parent=1 // pred_check_branch
      %56 = sbr.rel (0) target = $region21
    $region20: #{tpu_custom_call.1} parent=1 // pred_region
      _
    $region21: #{tpu_custom_call.1} parent=1 // pred_fallthru
      _
    // Predicated region
    $region22: #{tpu_custom_call.1} parent=1 // pred_check
      _
    $region23: #{tpu_custom_call.1} parent=1 // pred_check_branch
      %58 = sbr.rel (0) target = $region25
    $region24: #{tpu_custom_call.1} parent=1 // pred_region
      %s60 = ssub.s32 1024, 1024
      %61 = vsyncadd [#allocation9], %s60
      %s62 = sshll.u32 [#allocation8], 4
      %s63 = int_to_ptr.vmem [resolvable:$true] %s62
      %68 = dma.hbm_to_vmem [thread:$0]  %s5, 1024, %s63, [#allocation9], 64, 64, 4
    $region25: #{tpu_custom_call.1} parent=1 // pred_fallthru
      _
    // Predicated region
    $region26: #{tpu_custom_call.1} parent=1 // pred_check
      _
    $region27: #{tpu_custom_call.1} parent=1 // pred_check_branch
      %70 = sbr.rel (0) target = $region29
    $region28: #{tpu_custom_call.1} parent=1 // pred_region
      _
    $region29: #{tpu_custom_call.1} parent=1 // pred_fallthru
      _
    // Predicated region
    $region30: #{tpu_custom_call.1} parent=1 // pred_check
      _
    $region31: #{tpu_custom_call.1} parent=1 // pred_check_branch
      %72 = sbr.rel (0) target = $region33
    $region32: #{tpu_custom_call.1} parent=1 // pred_region
      _
    $region33: #{tpu_custom_call.1} parent=1 // pred_fallthru
      _
    // Predicated region
    $region34: #{tpu_custom_call.1} parent=1 // pred_check
      _
    $region35: #{tpu_custom_call.1} parent=1 // pred_check_branch
      %74 = sbr.rel (0) target = $region37
    $region36: #{tpu_custom_call.1} parent=1 // pred_region
      %75 = dma.done [#allocation3], 128
    $region37: #{tpu_custom_call.1} parent=1 // pred_fallthru
      _
    // Predicated region
    $region38: #{tpu_custom_call.1} parent=1 // pred_check
      _
    $region39: #{tpu_custom_call.1} parent=1 // pred_check_branch
      %77 = sbr.rel (0) target = $region41
    $region40: #{tpu_custom_call.1} parent=1 // pred_region
      %78 = dma.done [#allocation6], 1024
    $region41: #{tpu_custom_call.1} parent=1 // pred_fallthru
      _
    // Predicated region
    $region42: #{tpu_custom_call.1} parent=1 // pred_check
      _
    $region43: #{tpu_custom_call.1} parent=1 // pred_check_branch
      %80 = sbr.rel (0) target = $region45
    $region44: #{tpu_custom_call.1} parent=1 // pred_region
      %81 = dma.done [#allocation6], 1024
    $region45: #{tpu_custom_call.1} parent=1 // pred_fallthru
      _
    // Predicated region
    $region46: #{tpu_custom_call.1} parent=1 // pred_check
      _
    $region47: #{tpu_custom_call.1} parent=1 // pred_check_branch
      %83 = sbr.rel (0) target = $region49
    $region48: #{tpu_custom_call.1} parent=1 // pred_region
      %84 = dma.done [#allocation9], 1024
    $region49: #{tpu_custom_call.1} parent=1 // pred_fallthru
      _
    %v87 = vld [vmem:[#allocation2] sm:$0xf]
    %v88 = vld [vmem:[#allocation2 + $0x4] sm:$0xf]
    %v89 = vld [vmem:[#allocation5] sm:$0xf]
    %v90 = vld [vmem:[#allocation5 + $0x4] sm:$0xf]
    %v91 = vld [vmem:[#allocation5 + $0x8] sm:$0xf]
    %v92 = vld [vmem:[#allocation5 + $0xc] sm:$0xf]
    %v93 = vld [vmem:[#allocation5 + $0x10] sm:$0xf]
    %v94 = vld [vmem:[#allocation5 + $0x14] sm:$0xf]
    %v95 = vld [vmem:[#allocation5 + $0x18] sm:$0xf]
    %v96 = vld [vmem:[#allocation5 + $0x1c] sm:$0xf]
    %v97 = vld [vmem:[#allocation5 + $0x20] sm:$0xf]
    %v98 = vld [vmem:[#allocation5 + $0x24] sm:$0xf]
    %v99 = vld [vmem:[#allocation5 + $0x28] sm:$0xf]
    %v100 = vld [vmem:[#allocation5 + $0x2c] sm:$0xf]
    %v101 = vld [vmem:[#allocation5 + $0x30] sm:$0xf]
    %v102 = vld [vmem:[#allocation5 + $0x34] sm:$0xf]
    %v103 = vld [vmem:[#allocation5 + $0x38] sm:$0xf]
    %v104 = vld [vmem:[#allocation5 + $0x3c] sm:$0xf]
    %v105 = vld [vmem:[%s2] sm:$0x1]
    %v107 = vlaneseq
    %v108 = vshrl.u32 %v107, 7
    %v109 = vsub.s32 0, %v108
    %v110 = vrot.slane %v105, %v109
    %v114 = vunpack.c.l.b16 %v87
    %v115 = vunpack.c.l.b16 %v88
    %v116 = vpack.c.b16 %v115, %v114
    %v134 = vunpack.c.l.b16 %v89
    %v135 = vunpack.c.l.b16 %v90
    %v136 = vunpack.c.l.b16 %v91
    %v137 = vunpack.c.l.b16 %v92
    %v138 = vunpack.c.l.b16 %v93
    %v139 = vunpack.c.l.b16 %v94
    %v140 = vunpack.c.l.b16 %v95
    %v141 = vunpack.c.l.b16 %v96
    %v142 = vunpack.c.l.b16 %v97
    %v143 = vunpack.c.l.b16 %v98
    %v144 = vunpack.c.l.b16 %v99
    %v145 = vunpack.c.l.b16 %v100
    %v146 = vunpack.c.l.b16 %v101
    %v147 = vunpack.c.l.b16 %v102
    %v148 = vunpack.c.l.b16 %v103
    %v149 = vunpack.c.l.b16 %v104
    %v150 = vpack.c.b16 %v135, %v134
    %v151 = vpack.c.b16 %v137, %v136
    %v152 = vpack.c.b16 %v139, %v138
    %v153 = vpack.c.b16 %v141, %v140
    %v154 = vpack.c.b16 %v143, %v142
    %v155 = vpack.c.b16 %v145, %v144
    %v156 = vpack.c.b16 %v147, %v146
    %v157 = vpack.c.b16 %v149, %v148
    %166 = vmatprep.subr.bf16.mxu0 0
    %167 = vmatpush1.bf16.msra.mxu0 %v150
    %168 = vmatprep.subr.bf16.mxu0 0
    %169 = vmatpush1.bf16.msra.mxu0 %v151
    %170 = vmatprep.subr.bf16.mxu0 0
    %171 = vmatpush1.bf16.msra.mxu0 %v152
    %172 = vmatprep.subr.bf16.mxu0 0
    %173 = vmatpush1.bf16.msra.mxu0 %v153
    %174 = vmatprep.subr.bf16.mxu0 0
    %175 = vmatpush1.bf16.msra.mxu0 %v154
    %176 = vmatprep.subr.bf16.mxu0 0
    %177 = vmatpush1.bf16.msra.mxu0 %v155
    %178 = vmatprep.subr.bf16.mxu0 0
    %179 = vmatpush1.bf16.msra.mxu0 %v156
    %180 = vmatprep.subr.bf16.mxu0 0
    %181 = vmatpush1.bf16.msra.mxu0 %v157
    %182 = vmatprep.subr.bf16.mxu0 0
    %183 = vmatpush1.bf16.msra.mxu0 0
    %184 = vmatprep.subr.bf16.mxu0 0
    %185 = vmatpush1.bf16.msra.mxu0 0
    %186 = vmatprep.subr.bf16.mxu0 0
    %187 = vmatpush1.bf16.msra.mxu0 0
    %188 = vmatprep.subr.bf16.mxu0 0
    %189 = vmatpush1.bf16.msra.mxu0 0
    %190 = vmatprep.subr.bf16.mxu0 0
    %191 = vmatpush1.bf16.msra.mxu0 0
    %192 = vmatprep.subr.bf16.mxu0 0
    %193 = vmatpush1.bf16.msra.mxu0 0
    %194 = vmatprep.subr.bf16.mxu0 0
    %195 = vmatpush1.bf16.msra.mxu0 0
    %196 = vmatprep.subr.bf16.mxu0 0
    %197 = vmatpush1.bf16.msra.mxu0 0
    %198 = vmatprep.mubr.bf16.mxu0 0
    %199 = vmatmul.mubr.bf16.gmra.mrb[0].mxu0 %v116
    %v200 = vpop.f32.mrb[0].mxu0
    %v201 = vadd.f32 %v110, %v200
    %v202 = vpop.f32.mrb[0].mxu0
    %v203 = vpop.f32.mrb[0].mxu0
    %v204 = vadd.f32 %v110, %v203
    %v205 = vpop.f32.mrb[0].mxu0
    %206 = vdwg.mxu0
    %v207 = vpack.c.bf16 %v204, %v201
    %v208 = vxor.u32 %v207, 2147516416
    %v210 = vmul.bf16 %v208, 1069105081
    %v211 = vpow.bf16.pop %v210
    %v212 = vadd.bf16 %v211, 1065369472
    %v213 = vrcp.bf16.pop %v212
    %v214 = vmul.bf16 1065369472, %v213
    %v215 = vmul.bf16 %v207, %v214
    %v216 = vld [vmem:[#allocation7] sm:$0xf]
    %v217 = vld [vmem:[#allocation7 + $0x4] sm:$0xf]
    %v218 = vld [vmem:[#allocation7 + $0x8] sm:$0xf]
    %v219 = vld [vmem:[#allocation7 + $0xc] sm:$0xf]
    %v220 = vld [vmem:[#allocation7 + $0x10] sm:$0xf]
    %v221 = vld [vmem:[#allocation7 + $0x14] sm:$0xf]
    %v222 = vld [vmem:[#allocation7 + $0x18] sm:$0xf]
    %v223 = vld [vmem:[#allocation7 + $0x1c] sm:$0xf]
    %v224 = vld [vmem:[#allocation7 + $0x20] sm:$0xf]
    %v225 = vld [vmem:[#allocation7 + $0x24] sm:$0xf]
    %v226 = vld [vmem:[#allocation7 + $0x28] sm:$0xf]
    %v227 = vld [vmem:[#allocation7 + $0x2c] sm:$0xf]
    %v228 = vld [vmem:[#allocation7 + $0x30] sm:$0xf]
    %v229 = vld [vmem:[#allocation7 + $0x34] sm:$0xf]
    %v230 = vld [vmem:[#allocation7 + $0x38] sm:$0xf]
    %v231 = vld [vmem:[#allocation7 + $0x3c] sm:$0xf]
    %v232 = vld [vmem:[%s4] sm:$0x1]
    %v234 = vlaneseq
    %v235 = vshrl.u32 %v234, 7
    %v236 = vsub.s32 0, %v235
    %v237 = vrot.slane %v232, %v236
    %v255 = vunpack.c.l.b16 %v216
    %v256 = vunpack.c.l.b16 %v217
    %v257 = vunpack.c.l.b16 %v218
    %v258 = vunpack.c.l.b16 %v219
    %v259 = vunpack.c.l.b16 %v220
    %v260 = vunpack.c.l.b16 %v221
    %v261 = vunpack.c.l.b16 %v222
    %v262 = vunpack.c.l.b16 %v223
    %v263 = vunpack.c.l.b16 %v224
    %v264 = vunpack.c.l.b16 %v225
    %v265 = vunpack.c.l.b16 %v226
    %v266 = vunpack.c.l.b16 %v227
    %v267 = vunpack.c.l.b16 %v228
    %v268 = vunpack.c.l.b16 %v229
    %v269 = vunpack.c.l.b16 %v230
    %v270 = vunpack.c.l.b16 %v231
    %v271 = vpack.c.b16 %v256, %v255
    %v272 = vpack.c.b16 %v258, %v257
    %v273 = vpack.c.b16 %v260, %v259
    %v274 = vpack.c.b16 %v262, %v261
    %v275 = vpack.c.b16 %v264, %v263
    %v276 = vpack.c.b16 %v266, %v265
    %v277 = vpack.c.b16 %v268, %v267
    %v278 = vpack.c.b16 %v270, %v269
    %287 = vmatprep.subr.bf16.mxu0 0
    %288 = vmatpush1.bf16.msra.mxu0 %v271
    %289 = vmatprep.subr.bf16.mxu0 0
    %290 = vmatpush1.bf16.msra.mxu0 %v272
    %291 = vmatprep.subr.bf16.mxu0 0
    %292 = vmatpush1.bf16.msra.mxu0 %v273
    %293 = vmatprep.subr.bf16.mxu0 0
    %294 = vmatpush1.bf16.msra.mxu0 %v274
    %295 = vmatprep.subr.bf16.mxu0 0
    %296 = vmatpush1.bf16.msra.mxu0 %v275
    %297 = vmatprep.subr.bf16.mxu0 0
    %298 = vmatpush1.bf16.msra.mxu0 %v276
    %299 = vmatprep.subr.bf16.mxu0 0
    %300 = vmatpush1.bf16.msra.mxu0 %v277
    %301 = vmatprep.subr.bf16.mxu0 0
    %302 = vmatpush1.bf16.msra.mxu0 %v278
    %303 = vmatprep.subr.bf16.mxu0 0
    %304 = vmatpush1.bf16.msra.mxu0 0
    %305 = vmatprep.subr.bf16.mxu0 0
    %306 = vmatpush1.bf16.msra.mxu0 0
    %307 = vmatprep.subr.bf16.mxu0 0
    %308 = vmatpush1.bf16.msra.mxu0 0
    %309 = vmatprep.subr.bf16.mxu0 0
    %310 = vmatpush1.bf16.msra.mxu0 0
    %311 = vmatprep.subr.bf16.mxu0 0
    %312 = vmatpush1.bf16.msra.mxu0 0
    %313 = vmatprep.subr.bf16.mxu0 0
    %314 = vmatpush1.bf16.msra.mxu0 0
    %315 = vmatprep.subr.bf16.mxu0 0
    %316 = vmatpush1.bf16.msra.mxu0 0
    %317 = vmatprep.subr.bf16.mxu0 0
    %318 = vmatpush1.bf16.msra.mxu0 0
    %319 = vmatprep.mubr.bf16.mxu0 0
    %320 = vmatmul.mubr.bf16.gmra.mrb[0].mxu0 %v215
    %v321 = vpop.f32.mrb[0].mxu0
    %v322 = vadd.f32 %v237, %v321
    %v323 = vpop.f32.mrb[0].mxu0
    %v324 = vpop.f32.mrb[0].mxu0
    %v325 = vadd.f32 %v237, %v324
    %v326 = vpop.f32.mrb[0].mxu0
    %327 = vdwg.mxu0
    %v328 = vpack.c.bf16 %v325, %v322
    %v329 = vxor.u32 %v328, 2147516416
    %v331 = vmul.bf16 %v329, 1069105081
    %v332 = vpow.bf16.pop %v331
    %v333 = vadd.bf16 %v332, 1065369472
    %v334 = vrcp.bf16.pop %v333
    %v335 = vmul.bf16 1065369472, %v334
    %v336 = vmul.bf16 %v328, %v335
    %v337 = vld [vmem:[#allocation8] sm:$0xf]
    %v338 = vld [vmem:[#allocation8 + $0x4] sm:$0xf]
    %v339 = vld [vmem:[#allocation8 + $0x8] sm:$0xf]
    %v340 = vld [vmem:[#allocation8 + $0xc] sm:$0xf]
    %v341 = vld [vmem:[#allocation8 + $0x10] sm:$0xf]
    %v342 = vld [vmem:[#allocation8 + $0x14] sm:$0xf]
    %v343 = vld [vmem:[#allocation8 + $0x18] sm:$0xf]
    %v344 = vld [vmem:[#allocation8 + $0x1c] sm:$0xf]
    %v345 = vld [vmem:[#allocation8 + $0x20] sm:$0xf]
    %v346 = vld [vmem:[#allocation8 + $0x24] sm:$0xf]
    %v347 = vld [vmem:[#allocation8 + $0x28] sm:$0xf]
    %v348 = vld [vmem:[#allocation8 + $0x2c] sm:$0xf]
    %v349 = vld [vmem:[#allocation8 + $0x30] sm:$0xf]
    %v350 = vld [vmem:[#allocation8 + $0x34] sm:$0xf]
    %v351 = vld [vmem:[#allocation8 + $0x38] sm:$0xf]
    %v352 = vld [vmem:[#allocation8 + $0x3c] sm:$0xf]
    %v353 = vld [vmem:[%s6] sm:$0x1]
    %v355 = vlaneseq
    %v356 = vshrl.u32 %v355, 7
    %v357 = vsub.s32 0, %v356
    %v358 = vrot.slane %v353, %v357
    %v376 = vunpack.c.l.b16 %v337
    %v377 = vunpack.c.l.b16 %v338
    %v378 = vunpack.c.l.b16 %v339
    %v379 = vunpack.c.l.b16 %v340
    %v380 = vunpack.c.l.b16 %v341
    %v381 = vunpack.c.l.b16 %v342
    %v382 = vunpack.c.l.b16 %v343
    %v383 = vunpack.c.l.b16 %v344
    %v384 = vunpack.c.l.b16 %v345
    %v385 = vunpack.c.l.b16 %v346
    %v386 = vunpack.c.l.b16 %v347
    %v387 = vunpack.c.l.b16 %v348
    %v388 = vunpack.c.l.b16 %v349
    %v389 = vunpack.c.l.b16 %v350
    %v390 = vunpack.c.l.b16 %v351
    %v391 = vunpack.c.l.b16 %v352
    %v392 = vpack.c.b16 %v377, %v376
    %v393 = vpack.c.b16 %v379, %v378
    %v394 = vpack.c.b16 %v381, %v380
    %v395 = vpack.c.b16 %v383, %v382
    %v396 = vpack.c.b16 %v385, %v384
    %v397 = vpack.c.b16 %v387, %v386
    %v398 = vpack.c.b16 %v389, %v388
    %v399 = vpack.c.b16 %v391, %v390
    %408 = vmatprep.subr.bf16.mxu0 0
    %409 = vmatpush1.bf16.msra.mxu0 %v392
    %410 = vmatprep.subr.bf16.mxu0 0
    %411 = vmatpush1.bf16.msra.mxu0 %v393
    %412 = vmatprep.subr.bf16.mxu0 0
    %413 = vmatpush1.bf16.msra.mxu0 %v394
    %414 = vmatprep.subr.bf16.mxu0 0
    %415 = vmatpush1.bf16.msra.mxu0 %v395
    %416 = vmatprep.subr.bf16.mxu0 0
    %417 = vmatpush1.bf16.msra.mxu0 %v396
    %418 = vmatprep.subr.bf16.mxu0 0
    %419 = vmatpush1.bf16.msra.mxu0 %v397
    %420 = vmatprep.subr.bf16.mxu0 0
    %421 = vmatpush1.bf16.msra.mxu0 %v398
    %422 = vmatprep.subr.bf16.mxu0 0
    %423 = vmatpush1.bf16.msra.mxu0 %v399
    %424 = vmatprep.subr.bf16.mxu0 0
    %425 = vmatpush1.bf16.msra.mxu0 0
    %426 = vmatprep.subr.bf16.mxu0 0
    %427 = vmatpush1.bf16.msra.mxu0 0
    %428 = vmatprep.subr.bf16.mxu0 0
    %429 = vmatpush1.bf16.msra.mxu0 0
    %430 = vmatprep.subr.bf16.mxu0 0
    %431 = vmatpush1.bf16.msra.mxu0 0
    %432 = vmatprep.subr.bf16.mxu0 0
    %433 = vmatpush1.bf16.msra.mxu0 0
    %434 = vmatprep.subr.bf16.mxu0 0
    %435 = vmatpush1.bf16.msra.mxu0 0
    %436 = vmatprep.subr.bf16.mxu0 0
    %437 = vmatpush1.bf16.msra.mxu0 0
    %438 = vmatprep.subr.bf16.mxu0 0
    %439 = vmatpush1.bf16.msra.mxu0 0
    %440 = vmatprep.mubr.bf16.mxu0 0
    %441 = vmatmul.mubr.bf16.gmra.mrb[0].mxu0 %v336
    %v442 = vpop.f32.mrb[0].mxu0
    %v443 = vadd.f32 %v358, %v442
    %v444 = vpop.f32.mrb[0].mxu0
    %v445 = vpop.f32.mrb[0].mxu0
    %v446 = vadd.f32 %v358, %v445
    %v447 = vpop.f32.mrb[0].mxu0
    %448 = vdwg.mxu0
    %v449 = vld [vmem:[%s7] sm:$0x1]
    %vm450 = vcmp.ne.f32.partialorder %v449, 0.0
    %v451 = vxor.u32 %v443, 2147483648
    %v452 = vxor.u32 %v446, 2147483648
    %v453 = vmul.f32 %v451, 1.442695
    %v454 = vpow.pop %v453
    %v455 = vmul.f32 %v452, 1.442695
    %v456 = vpow.pop %v455
    %v457 = vadd.f32 %v454, 1.0
    %v458 = vadd.f32 %v456, 1.0
    %v459 = vrcp.pop %v457
    %v460 = vmul.f32 1.0, %v459
    %v461 = vrcp.pop %v458
    %v462 = vmul.f32 1.0, %v461
    %v463 = vsel %vm450, 1, 0
    %v464 = vlaneseq
    %v465 = vshrl.u32 %v464, 7
    %v466 = vsub.s32 0, %v465
    %v467 = vrot.slane %v463, %v466
    %vm468 = vcmp.eq.s32.totalorder %v467, 1
    %v469 = vsel %vm468, %v460, %v443
    %v470 = vsel %vm468, %v462, %v446
    %471 = vst [vmem:[#allocation10] sm:$0xff] %v469
    %472 = vst [vmem:[#allocation10 + $0x8] sm:$0xff] %v470
    // Predicated region
    $region50: #{tpu_custom_call.1} parent=1 // pred_check
      _
    $region51: #{tpu_custom_call.1} parent=1 // pred_check_branch
      %474 = sbr.rel (0) target = $region53
    $region52: #{tpu_custom_call.1} parent=1 // pred_region
      %s476 = ssub.s32 256, 256
      %477 = vsyncadd [#allocation4], %s476
      %s478 = sshll.u32 [#allocation10], 4
      %s479 = int_to_ptr.vmem [resolvable:$true] %s478
      %484 = dma.vmem_to_hbm [thread:$0]  %s479, 256, %s8, [#allocation4], 128, 128, 8
    $region53: #{tpu_custom_call.1} parent=1 // pred_fallthru
      _
    // Predicated region
    $region54: #{tpu_custom_call.1} parent=1 // pred_check
      _
    $region55: #{tpu_custom_call.1} parent=1 // pred_check_branch
      %486 = sbr.rel (0) target = $region57
    $region56: #{tpu_custom_call.1} parent=1 // pred_region
      %487 = dma.done [#allocation4], 256
    $region57: #{tpu_custom_call.1} parent=1 // pred_fallthru
      _
    %488 = vsyncpa [#allocation3], 1
    %489 = vsyncpa [#allocation6], 1
    %490 = vsyncpa [#allocation9], 1
    %491 = vsyncpa [#allocation4], 1

// kernel: tpu_custom_call.1
$region0: #{tpu_custom_call.1}
  #allocation0 [shape = 'u32[]', space=smem, size = 0x4, offset = 0x4, fixed_abs, tag = 'smem constant byte address 0x4 - core index']
  #allocation1 [shape = 'u32[144,128]{1,0:T(1,128)}', space=vmem, size = 0x12000, scoped, tag = 'internal scratch']
  %s0 = inlined_call_operand.hbm [shape: bf16[16,128], index: 0, kind: input, shape index: {}]
  %s1 = inlined_call_operand.hbm [shape: bf16[128,128], index: 1, kind: input, shape index: {}]
  %s2 = inlined_call_operand.vmem [shape: f32[1,128], index: 2, kind: input, shape index: {}]
  %s3 = inlined_call_operand.hbm [shape: bf16[128,128], index: 3, kind: input, shape index: {}]
  %s4 = inlined_call_operand.vmem [shape: f32[1,128], index: 4, kind: input, shape index: {}]
  %s5 = inlined_call_operand.hbm [shape: bf16[128,128], index: 5, kind: input, shape index: {}]
  %s6 = inlined_call_operand.vmem [shape: f32[1,128], index: 6, kind: input, shape index: {}]
  %s7 = inlined_call_operand.vmem [shape: f32[1,128], index: 7, kind: input, shape index: {}]
  %s8 = inlined_call_operand.hbm [shape: f32[16,128], index: 8, kind: output, shape index: {}]
  %s9 = sld [smem:[#allocation0]]
  $region58: #{tpu_custom_call.1} parent=0
    _
  %s11 = ssub.s32 1, %s9
  %s12 = scalar_select 0, %s11, %s9
  $region1: #{tpu_custom_call.1} parent=0
    #allocation2 [shape = 'u8[4096]{0}', space=vmem, size = 0x1000, scoped, tag = 'input window, operand 0, single buffered']
    #allocation3 [shape = 's32[1]{0}', space=sflag, size = 0x4, scoped, tag = 'scoped memory for tpu_custom_call.1']
    #allocation4 [shape = 's32[1]{0}', space=sflag, size = 0x4, scoped, tag = 'scoped memory for tpu_custom_call.1']
    #allocation5 [shape = 'u8[32768]{0}', space=vmem, size = 0x8000, scoped, tag = 'input window, operand 1, single buffered']
    #allocation6 [shape = 's32[1]{0}', space=sflag, size = 0x4, scoped, tag = 'scoped memory for tpu_custom_call.1']
    #allocation7 [shape = 'u8[32768]{0}', space=vmem, size = 0x8000, scoped, tag = 'input window, operand 3, single buffered']
    #allocation8 [shape = 'u8[32768]{0}', space=vmem, size = 0x8000, scoped, tag = 'input window, operand 5, single buffered']
    #allocation9 [shape = 's32[1]{0}', space=sflag, size = 0x4, scoped, tag = 'scoped memory for tpu_custom_call.1']
    #allocation10 [shape = 'u8[8192]{0}', space=vmem, size = 0x2000, scoped, tag = 'output window, operand 0, single buffered']
    %13 = vsyncpa [#allocation3], 0
    %14 = vsyncpa [#allocation6], 0
    %15 = vsyncpa [#allocation9], 0
    %16 = vsyncpa [#allocation4], 0
    // Predicated region
    $region2: #{tpu_custom_call.1} parent=1 // pred_check
      _
    $region3: #{tpu_custom_call.1} parent=1 // pred_check_branch
      %18 = sbr.rel (0) target = $region5
    $region4: #{tpu_custom_call.1} parent=1 // pred_region
      %s20 = ssub.s32 128, 128
      %21 = vsyncadd [#allocation3], %s20
      %s22 = sshll.u32 [#allocation2], 4
      %s23 = int_to_ptr.vmem [resolvable:$true] %s22
      %28 = dma.hbm_to_vmem [thread:$0]  %s0, 128, %s23, [#allocation3], 64, 64, 4
    $region5: #{tpu_custom_call.1} parent=1 // pred_fallthru
      _
    // Predicated region
    $region6: #{tpu_custom_call.1} parent=1 // pred_check
      _
    $region7: #{tpu_custom_call.1} parent=1 // pred_check_branch
      %30 = sbr.rel (0) target = $region9
    $region8: #{tpu_custom_call.1} parent=1 // pred_region
      %s32 = ssub.s32 1024, 1024
      %33 = vsyncadd [#allocation6], %s32
      %s34 = sshll.u32 [#allocation5], 4
      %s35 = int_to_ptr.vmem [resolvable:$true] %s34
      %40 = dma.hbm_to_vmem [thread:$0]  %s1, 1024, %s35, [#allocation6], 64, 64, 4
    $region9: #{tpu_custom_call.1} parent=1 // pred_fallthru
      _
    // Predicated region
    $region10: #{tpu_custom_call.1} parent=1 // pred_check
      _
    $region11: #{tpu_custom_call.1} parent=1 // pred_check_branch
      %42 = sbr.rel (0) target = $region13
    $region12: #{tpu_custom_call.1} parent=1 // pred_region
      _
    $region13: #{tpu_custom_call.1} parent=1 // pred_fallthru
      _
    // Predicated region
    $region14: #{tpu_custom_call.1} parent=1 // pred_check
      _
    $region15: #{tpu_custom_call.1} parent=1 // pred_check_branch
      %44 = sbr.rel (0) target = $region17
    $region16: #{tpu_custom_call.1} parent=1 // pred_region
      %s46 = ssub.s32 1024, 1024
      %47 = vsyncadd [#allocation6], %s46
      %s48 = sshll.u32 [#allocation7], 4
      %s49 = int_to_ptr.vmem [resolvable:$true] %s48
      %54 = dma.hbm_to_vmem [thread:$0]  %s3, 1024, %s49, [#allocation6], 64, 64, 4
    $region17: #{tpu_custom_call.1} parent=1 // pred_fallthru
      _
    // Predicated region
    $region18: #{tpu_custom_call.1} parent=1 // pred_check
      _
    $region19: #{tpu_custom_call.1} parent=1 // pred_check_branch
      %56 = sbr.rel (0) target = $region21
    $region20: #{tpu_custom_call.1} parent=1 // pred_region
      _
    $region21: #{tpu_custom_call.1} parent=1 // pred_fallthru
      _
    // Predicated region
    $region22: #{tpu_custom_call.1} parent=1 // pred_check
      _
    $region23: #{tpu_custom_call.1} parent=1 // pred_check_branch
      %58 = sbr.rel (0) target = $region25
    $region24: #{tpu_custom_call.1} parent=1 // pred_region
      %s60 = ssub.s32 1024, 1024
      %61 = vsyncadd [#allocation9], %s60
      %s62 = sshll.u32 [#allocation8], 4
      %s63 = int_to_ptr.vmem [resolvable:$true] %s62
      %68 = dma.hbm_to_vmem [thread:$0]  %s5, 1024, %s63, [#allocation9], 64, 64, 4
    $region25: #{tpu_custom_call.1} parent=1 // pred_fallthru
      _
    // Predicated region
    $region26: #{tpu_custom_call.1} parent=1 // pred_check
      _
    $region27: #{tpu_custom_call.1} parent=1 // pred_check_branch
      %70 = sbr.rel (0) target = $region29
    $region28: #{tpu_custom_call.1} parent=1 // pred_region
      _
    $region29: #{tpu_custom_call.1} parent=1 // pred_fallthru
      _
    // Predicated region
    $region30: #{tpu_custom_call.1} parent=1 // pred_check
      _
    $region31: #{tpu_custom_call.1} parent=1 // pred_check_branch
      %72 = sbr.rel (0) target = $region33
    $region32: #{tpu_custom_call.1} parent=1 // pred_region
      _
    $region33: #{tpu_custom_call.1} parent=1 // pred_fallthru
      _
    // Predicated region
    $region34: #{tpu_custom_call.1} parent=1 // pred_check
      _
    $region35: #{tpu_custom_call.1} parent=1 // pred_check_branch
      %74 = sbr.rel (0) target = $region37
    $region36: #{tpu_custom_call.1} parent=1 // pred_region
      %75 = dma.done [#allocation3], 128
    $region37: #{tpu_custom_call.1} parent=1 // pred_fallthru
      _
    // Predicated region
    $region38: #{tpu_custom_call.1} parent=1 // pred_check
      _
    $region39: #{tpu_custom_call.1} parent=1 // pred_check_branch
      %77 = sbr.rel (0) target = $region41
    $region40: #{tpu_custom_call.1} parent=1 // pred_region
      %78 = dma.done [#allocation6], 1024
    $region41: #{tpu_custom_call.1} parent=1 // pred_fallthru
      _
    // Predicated region
    $region42: #{tpu_custom_call.1} parent=1 // pred_check
      _
    $region43: #{tpu_custom_call.1} parent=1 // pred_check_branch
      %80 = sbr.rel (0) target = $region45
    $region44: #{tpu_custom_call.1} parent=1 // pred_region
      %81 = dma.done [#allocation6], 1024
    $region45: #{tpu_custom_call.1} parent=1 // pred_fallthru
      _
    // Predicated region
    $region46: #{tpu_custom_call.1} parent=1 // pred_check
      _
    $region47: #{tpu_custom_call.1} parent=1 // pred_check_branch
      %83 = sbr.rel (0) target = $region49
    $region48: #{tpu_custom_call.1} parent=1 // pred_region
      %84 = dma.done [#allocation9], 1024
    $region49: #{tpu_custom_call.1} parent=1 // pred_fallthru
      _
    %v87 = vld [vmem:[#allocation2] sm:$0xf]
    %v88 = vld [vmem:[#allocation2 + $0x4] sm:$0xf]
    %v89 = vld [vmem:[#allocation5] sm:$0xf]
    %v90 = vld [vmem:[#allocation5 + $0x4] sm:$0xf]
    %v91 = vld [vmem:[#allocation5 + $0x8] sm:$0xf]
    %v92 = vld [vmem:[#allocation5 + $0xc] sm:$0xf]
    %v93 = vld [vmem:[#allocation5 + $0x10] sm:$0xf]
    %v94 = vld [vmem:[#allocation5 + $0x14] sm:$0xf]
    %v95 = vld [vmem:[#allocation5 + $0x18] sm:$0xf]
    %v96 = vld [vmem:[#allocation5 + $0x1c] sm:$0xf]
    %v97 = vld [vmem:[#allocation5 + $0x20] sm:$0xf]
    %v98 = vld [vmem:[#allocation5 + $0x24] sm:$0xf]
    %v99 = vld [vmem:[#allocation5 + $0x28] sm:$0xf]
    %v100 = vld [vmem:[#allocation5 + $0x2c] sm:$0xf]
    %v101 = vld [vmem:[#allocation5 + $0x30] sm:$0xf]
    %v102 = vld [vmem:[#allocation5 + $0x34] sm:$0xf]
    %v103 = vld [vmem:[#allocation5 + $0x38] sm:$0xf]
    %v104 = vld [vmem:[#allocation5 + $0x3c] sm:$0xf]
    %v105 = vld [vmem:[%s2] sm:$0x1]
    %v107 = vlaneseq
    %v108 = vshrl.u32 %v107, 7
    %v109 = vsub.s32 0, %v108
    %v110 = vrot.slane %v105, %v109
    %v114 = vunpack.c.l.b16 %v87
    %v115 = vunpack.c.l.b16 %v88
    %v116 = vpack.c.b16 %v115, %v114
    %v134 = vunpack.c.l.b16 %v89
    %v135 = vunpack.c.l.b16 %v90
    %v136 = vunpack.c.l.b16 %v91
    %v137 = vunpack.c.l.b16 %v92
    %v138 = vunpack.c.l.b16 %v93
    %v139 = vunpack.c.l.b16 %v94
    %v140 = vunpack.c.l.b16 %v95
    %v141 = vunpack.c.l.b16 %v96
    %v142 = vunpack.c.l.b16 %v97
    %v143 = vunpack.c.l.b16 %v98
    %v144 = vunpack.c.l.b16 %v99
    %v145 = vunpack.c.l.b16 %v100
    %v146 = vunpack.c.l.b16 %v101
    %v147 = vunpack.c.l.b16 %v102
    %v148 = vunpack.c.l.b16 %v103
    %v149 = vunpack.c.l.b16 %v104
    %v150 = vpack.c.b16 %v135, %v134
    %v151 = vpack.c.b16 %v137, %v136
    %v152 = vpack.c.b16 %v139, %v138
    %v153 = vpack.c.b16 %v141, %v140
    %v154 = vpack.c.b16 %v143, %v142
    %v155 = vpack.c.b16 %v145, %v144
    %v156 = vpack.c.b16 %v147, %v146
    %v157 = vpack.c.b16 %v149, %v148
    %166 = vmatprep.subr.bf16.mxu0 0
    %167 = vmatpush1.bf16.msra.mxu0 %v150
    %168 = vmatprep.subr.bf16.mxu0 0
    %169 = vmatpush1.bf16.msra.mxu0 %v151
    %170 = vmatprep.subr.bf16.mxu0 0
    %171 = vmatpush1.bf16.msra.mxu0 %v152
    %172 = vmatprep.subr.bf16.mxu0 0
    %173 = vmatpush1.bf16.msra.mxu0 %v153
    %174 = vmatprep.subr.bf16.mxu0 0
    %175 = vmatpush1.bf16.msra.mxu0 %v154
    %176 = vmatprep.subr.bf16.mxu0 0
    %177 = vmatpush1.bf16.msra.mxu0 %v155
    %178 = vmatprep.subr.bf16.mxu0 0
    %179 = vmatpush1.bf16.msra.mxu0 %v156
    %180 = vmatprep.subr.bf16.mxu0 0
    %181 = vmatpush1.bf16.msra.mxu0 %v157
    %182 = vmatprep.subr.bf16.mxu0 0
    %183 = vmatpush1.bf16.msra.mxu0 0
    %184 = vmatprep.subr.bf16.mxu0 0
    %185 = vmatpush1.bf16.msra.mxu0 0
    %186 = vmatprep.subr.bf16.mxu0 0
    %187 = vmatpush1.bf16.msra.mxu0 0
    %188 = vmatprep.subr.bf16.mxu0 0
    %189 = vmatpush1.bf16.msra.mxu0 0
    %190 = vmatprep.subr.bf16.mxu0 0
    %191 = vmatpush1.bf16.msra.mxu0 0
    %192 = vmatprep.subr.bf16.mxu0 0
    %193 = vmatpush1.bf16.msra.mxu0 0
    %194 = vmatprep.subr.bf16.mxu0 0
    %195 = vmatpush1.bf16.msra.mxu0 0
    %196 = vmatprep.subr.bf16.mxu0 0
    %197 = vmatpush1.bf16.msra.mxu0 0
    %198 = vmatprep.mubr.bf16.mxu0 0
    %199 = vmatmul.mubr.bf16.gmra.mrb[0].mxu0 %v116
    %v200 = vpop.f32.mrb[0].mxu0
    %v201 = vadd.f32 %v110, %v200
    %v202 = vpop.f32.mrb[0].mxu0
    %v203 = vpop.f32.mrb[0].mxu0
    %v204 = vadd.f32 %v110, %v203
    %v205 = vpop.f32.mrb[0].mxu0
    %206 = vdwg.mxu0
    %v207 = vpack.c.bf16 %v204, %v201
    %v208 = vxor.u32 %v207, 2147516416
    %v210 = vmul.bf16 %v208, 1069105081
    %v211 = vpow.bf16.pop %v210
    %v212 = vadd.bf16 %v211, 1065369472
    %v213 = vrcp.bf16.pop %v212
    %v214 = vmul.bf16 1065369472, %v213
    %v215 = vmul.bf16 %v207, %v214
    %v216 = vld [vmem:[#allocation7] sm:$0xf]
    %v217 = vld [vmem:[#allocation7 + $0x4] sm:$0xf]
    %v218 = vld [vmem:[#allocation7 + $0x8] sm:$0xf]
    %v219 = vld [vmem:[#allocation7 + $0xc] sm:$0xf]
    %v220 = vld [vmem:[#allocation7 + $0x10] sm:$0xf]
    %v221 = vld [vmem:[#allocation7 + $0x14] sm:$0xf]
    %v222 = vld [vmem:[#allocation7 + $0x18] sm:$0xf]
    %v223 = vld [vmem:[#allocation7 + $0x1c] sm:$0xf]
    %v224 = vld [vmem:[#allocation7 + $0x20] sm:$0xf]
    %v225 = vld [vmem:[#allocation7 + $0x24] sm:$0xf]
    %v226 = vld [vmem:[#allocation7 + $0x28] sm:$0xf]
    %v227 = vld [vmem:[#allocation7 + $0x2c] sm:$0xf]
    %v228 = vld [vmem:[#allocation7 + $0x30] sm:$0xf]
    %v229 = vld [vmem:[#allocation7 + $0x34] sm:$0xf]
    %v230 = vld [vmem:[#allocation7 + $0x38] sm:$0xf]
    %v231 = vld [vmem:[#allocation7 + $0x3c] sm:$0xf]
    %v232 = vld [vmem:[%s4] sm:$0x1]
    %v234 = vlaneseq
    %v235 = vshrl.u32 %v234, 7
    %v236 = vsub.s32 0, %v235
    %v237 = vrot.slane %v232, %v236
    %v255 = vunpack.c.l.b16 %v216
    %v256 = vunpack.c.l.b16 %v217
    %v257 = vunpack.c.l.b16 %v218
    %v258 = vunpack.c.l.b16 %v219
    %v259 = vunpack.c.l.b16 %v220
    %v260 = vunpack.c.l.b16 %v221
    %v261 = vunpack.c.l.b16 %v222
    %v262 = vunpack.c.l.b16 %v223
    %v263 = vunpack.c.l.b16 %v224
    %v264 = vunpack.c.l.b16 %v225
    %v265 = vunpack.c.l.b16 %v226
    %v266 = vunpack.c.l.b16 %v227
    %v267 = vunpack.c.l.b16 %v228
    %v268 = vunpack.c.l.b16 %v229
    %v269 = vunpack.c.l.b16 %v230
    %v270 = vunpack.c.l.b16 %v231
    %v271 = vpack.c.b16 %v256, %v255
    %v272 = vpack.c.b16 %v258, %v257
    %v273 = vpack.c.b16 %v260, %v259
    %v274 = vpack.c.b16 %v262, %v261
    %v275 = vpack.c.b16 %v264, %v263
    %v276 = vpack.c.b16 %v266, %v265
    %v277 = vpack.c.b16 %v268, %v267
    %v278 = vpack.c.b16 %v270, %v269
    %287 = vmatprep.subr.bf16.mxu0 0
    %288 = vmatpush1.bf16.msra.mxu0 %v271
    %289 = vmatprep.subr.bf16.mxu0 0
    %290 = vmatpush1.bf16.msra.mxu0 %v272
    %291 = vmatprep.subr.bf16.mxu0 0
    %292 = vmatpush1.bf16.msra.mxu0 %v273
    %293 = vmatprep.subr.bf16.mxu0 0
    %294 = vmatpush1.bf16.msra.mxu0 %v274
    %295 = vmatprep.subr.bf16.mxu0 0
    %296 = vmatpush1.bf16.msra.mxu0 %v275
    %297 = vmatprep.subr.bf16.mxu0 0
    %298 = vmatpush1.bf16.msra.mxu0 %v276
    %299 = vmatprep.subr.bf16.mxu0 0
    %300 = vmatpush1.bf16.msra.mxu0 %v277
    %301 = vmatprep.subr.bf16.mxu0 0
    %302 = vmatpush1.bf16.msra.mxu0 %v278
    %303 = vmatprep.subr.bf16.mxu0 0
    %304 = vmatpush1.bf16.msra.mxu0 0
    %305 = vmatprep.subr.bf16.mxu0 0
    %306 = vmatpush1.bf16.msra.mxu0 0
    %307 = vmatprep.subr.bf16.mxu0 0
    %308 = vmatpush1.bf16.msra.mxu0 0
    %309 = vmatprep.subr.bf16.mxu0 0
    %310 = vmatpush1.bf16.msra.mxu0 0
    %311 = vmatprep.subr.bf16.mxu0 0
    %312 = vmatpush1.bf16.msra.mxu0 0
    %313 = vmatprep.subr.bf16.mxu0 0
    %314 = vmatpush1.bf16.msra.mxu0 0
    %315 = vmatprep.subr.bf16.mxu0 0
    %316 = vmatpush1.bf16.msra.mxu0 0
    %317 = vmatprep.subr.bf16.mxu0 0
    %318 = vmatpush1.bf16.msra.mxu0 0
    %319 = vmatprep.mubr.bf16.mxu0 0
    %320 = vmatmul.mubr.bf16.gmra.mrb[0].mxu0 %v215
    %v321 = vpop.f32.mrb[0].mxu0
    %v322 = vadd.f32 %v237, %v321
    %v323 = vpop.f32.mrb[0].mxu0
    %v324 = vpop.f32.mrb[0].mxu0
    %v325 = vadd.f32 %v237, %v324
    %v326 = vpop.f32.mrb[0].mxu0
    %327 = vdwg.mxu0
    %v328 = vpack.c.bf16 %v325, %v322
    %v329 = vxor.u32 %v328, 2147516416
    %v331 = vmul.bf16 %v329, 1069105081
    %v332 = vpow.bf16.pop %v331
    %v333 = vadd.bf16 %v332, 1065369472
    %v334 = vrcp.bf16.pop %v333
    %v335 = vmul.bf16 1065369472, %v334
    %v336 = vmul.bf16 %v328, %v335
    %v337 = vld [vmem:[#allocation8] sm:$0xf]
    %v338 = vld [vmem:[#allocation8 + $0x4] sm:$0xf]
    %v339 = vld [vmem:[#allocation8 + $0x8] sm:$0xf]
    %v340 = vld [vmem:[#allocation8 + $0xc] sm:$0xf]
    %v341 = vld [vmem:[#allocation8 + $0x10] sm:$0xf]
    %v342 = vld [vmem:[#allocation8 + $0x14] sm:$0xf]
    %v343 = vld [vmem:[#allocation8 + $0x18] sm:$0xf]
    %v344 = vld [vmem:[#allocation8 + $0x1c] sm:$0xf]
    %v345 = vld [vmem:[#allocation8 + $0x20] sm:$0xf]
    %v346 = vld [vmem:[#allocation8 + $0x24] sm:$0xf]
    %v347 = vld [vmem:[#allocation8 + $0x28] sm:$0xf]
    %v348 = vld [vmem:[#allocation8 + $0x2c] sm:$0xf]
    %v349 = vld [vmem:[#allocation8 + $0x30] sm:$0xf]
    %v350 = vld [vmem:[#allocation8 + $0x34] sm:$0xf]
    %v351 = vld [vmem:[#allocation8 + $0x38] sm:$0xf]
    %v352 = vld [vmem:[#allocation8 + $0x3c] sm:$0xf]
    %v353 = vld [vmem:[%s6] sm:$0x1]
    %v355 = vlaneseq
    %v356 = vshrl.u32 %v355, 7
    %v357 = vsub.s32 0, %v356
    %v358 = vrot.slane %v353, %v357
    %v376 = vunpack.c.l.b16 %v337
    %v377 = vunpack.c.l.b16 %v338
    %v378 = vunpack.c.l.b16 %v339
    %v379 = vunpack.c.l.b16 %v340
    %v380 = vunpack.c.l.b16 %v341
    %v381 = vunpack.c.l.b16 %v342
    %v382 = vunpack.c.l.b16 %v343
    %v383 = vunpack.c.l.b16 %v344
    %v384 = vunpack.c.l.b16 %v345
    %v385 = vunpack.c.l.b16 %v346
    %v386 = vunpack.c.l.b16 %v347
    %v387 = vunpack.c.l.b16 %v348
    %v388 = vunpack.c.l.b16 %v349
    %v389 = vunpack.c.l.b16 %v350
    %v390 = vunpack.c.l.b16 %v351
    %v391 = vunpack.c.l.b16 %v352
    %v392 = vpack.c.b16 %v377, %v376
    %v393 = vpack.c.b16 %v379, %v378
    %v394 = vpack.c.b16 %v381, %v380
    %v395 = vpack.c.b16 %v383, %v382
    %v396 = vpack.c.b16 %v385, %v384
    %v397 = vpack.c.b16 %v387, %v386
    %v398 = vpack.c.b16 %v389, %v388
    %v399 = vpack.c.b16 %v391, %v390
    %408 = vmatprep.subr.bf16.mxu0 0
    %409 = vmatpush1.bf16.msra.mxu0 %v392
    %410 = vmatprep.subr.bf16.mxu0 0
    %411 = vmatpush1.bf16.msra.mxu0 %v393
    %412 = vmatprep.subr.bf16.mxu0 0
    %413 = vmatpush1.bf16.msra.mxu0 %v394
    %414 = vmatprep.subr.bf16.mxu0 0
    %415 = vmatpush1.bf16.msra.mxu0 %v395
    %416 = vmatprep.subr.bf16.mxu0 0
    %417 = vmatpush1.bf16.msra.mxu0 %v396
    %418 = vmatprep.subr.bf16.mxu0 0
    %419 = vmatpush1.bf16.msra.mxu0 %v397
    %420 = vmatprep.subr.bf16.mxu0 0
    %421 = vmatpush1.bf16.msra.mxu0 %v398
    %422 = vmatprep.subr.bf16.mxu0 0
    %423 = vmatpush1.bf16.msra.mxu0 %v399
    %424 = vmatprep.subr.bf16.mxu0 0
    %425 = vmatpush1.bf16.msra.mxu0 0
    %426 = vmatprep.subr.bf16.mxu0 0
    %427 = vmatpush1.bf16.msra.mxu0 0
    %428 = vmatprep.subr.bf16.mxu0 0
    %429 = vmatpush1.bf16.msra.mxu0 0
    %430 = vmatprep.subr.bf16.mxu0 0
    %431 = vmatpush1.bf16.msra.mxu0 0
    %432 = vmatprep.subr.bf16.mxu0 0
    %433 = vmatpush1.bf16.msra.mxu0 0
    %434 = vmatprep.subr.bf16.mxu0 0
    %435 = vmatpush1.bf16.msra.mxu0 0
    %436 = vmatprep.subr.bf16.mxu0 0
    %437 = vmatpush1.bf16.msra.mxu0 0
    %438 = vmatprep.subr.bf16.mxu0 0
    %439 = vmatpush1.bf16.msra.mxu0 0
    %440 = vmatprep.mubr.bf16.mxu0 0
    %441 = vmatmul.mubr.bf16.gmra.mrb[0].mxu0 %v336
    %v442 = vpop.f32.mrb[0].mxu0
    %v443 = vadd.f32 %v358, %v442
    %v444 = vpop.f32.mrb[0].mxu0
    %v445 = vpop.f32.mrb[0].mxu0
    %v446 = vadd.f32 %v358, %v445
    %v447 = vpop.f32.mrb[0].mxu0
    %448 = vdwg.mxu0
    %v449 = vld [vmem:[%s7] sm:$0x1]
    %vm450 = vcmp.ne.f32.partialorder %v449, 0.0
    %v451 = vxor.u32 %v443, 2147483648
    %v452 = vxor.u32 %v446, 2147483648
    %v453 = vmul.f32 %v451, 1.442695
    %v454 = vpow.pop %v453
    %v455 = vmul.f32 %v452, 1.442695
    %v456 = vpow.pop %v455
    %v457 = vadd.f32 %v454, 1.0
    %v458 = vadd.f32 %v456, 1.0
    %v459 = vrcp.pop %v457
    %v460 = vmul.f32 1.0, %v459
    %v461 = vrcp.pop %v458
    %v462 = vmul.f32 1.0, %v461
    %v463 = vsel %vm450, 1, 0
    %v464 = vlaneseq
    %v465 = vshrl.u32 %v464, 7
    %v466 = vsub.s32 0, %v465
    %v467 = vrot.slane %v463, %v466
    %vm468 = vcmp.eq.s32.totalorder %v467, 1
    %v469 = vsel %vm468, %v460, %v443
    %v470 = vsel %vm468, %v462, %v446
    %471 = vst [vmem:[#allocation10] sm:$0xff] %v469
    %472 = vst [vmem:[#allocation10 + $0x8] sm:$0xff] %v470
    // Predicated region
    $region50: #{tpu_custom_call.1} parent=1 // pred_check
      _
    $region51: #{tpu_custom_call.1} parent=1 // pred_check_branch
      %474 = sbr.rel (0) target = $region53
    $region52: #{tpu_custom_call.1} parent=1 // pred_region
      %s476 = ssub.s32 256, 256
      %477 = vsyncadd [#allocation4], %s476
      %s478 = sshll.u32 [#allocation10], 4
      %s479 = int_to_ptr.vmem [resolvable:$true] %s478
      %484 = dma.vmem_to_hbm [thread:$0]  %s479, 256, %s8, [#allocation4], 128, 128, 8
    $region53: #{tpu_custom_call.1} parent=1 // pred_fallthru
      _
    // Predicated region
    $region54: #{tpu_custom_call.1} parent=1 // pred_check
      _
    $region55: #{tpu_custom_call.1} parent=1 // pred_check_branch
      %486 = sbr.rel (0) target = $region57
    $region56: #{tpu_custom_call.1} parent=1 // pred_region
      %487 = dma.done [#allocation4], 256
    $region57: #{tpu_custom_call.1} parent=1 // pred_fallthru
      _
    %488 = vsyncpa [#allocation3], 1
    %489 = vsyncpa [#allocation6], 1
    %490 = vsyncpa [#allocation9], 1
    %491 = vsyncpa [#allocation4], 1

</llo_original>
